<compile_context>
chip_gen: v5e
topology: v5e:2x2
jax: 0.10.0
libtpu: 0.0.40
codegen_flags: <defaults>
</compile_context>

<pallas_src>
import functools

import jax
import jax.numpy as jnp
from jax import lax
from jax.experimental import pallas as pl
from jax.experimental.pallas import tpu as pltpu


def _conv_bn_relu_kernel(x_ref, w_ref, m_ref, b_ref, o_ref, *, shifts):
    """One image per grid step; lane axis = flattened output spatial (Ho*Wo).

    x_ref: (1, C, HW)     flattened input image (C = Cin, or 4*Cin for s2d)
    w_ref: (T, Cout, C)   per-tap weight matrices (BN scale pre-folded)
    m_ref: (T, 1, HW)     per-tap 0/1 boundary masks (implement zero padding)
    b_ref: (Cout, 1)      folded BN bias
    o_ref: (1, Cout, HW)  output, lane-dense on HW
    """
    x = x_ref[0]                                   # (C, HW)
    cout = w_ref.shape[1]
    hw = x.shape[-1]

    acc = jnp.zeros((cout, hw), jnp.float32)
    for t, s in enumerate(shifts):                 # static unroll over taps
        if s == 0:                                 # center tap: no shift/mask
            patch = x
        else:
            xs = pltpu.roll(x, s, axis=1)          # XLU lane rotation
            patch = xs * m_ref[t]                  # zero out-of-bounds taps
        acc = acc + jnp.dot(w_ref[t], patch, preferred_element_type=jnp.float32)

    # Fused BN bias + ReLU (scale already folded into the weights).
    y = jnp.maximum(acc + b_ref[...], 0.0)
    o_ref[0] = y.astype(o_ref.dtype)


def conv_bn_relu(x_nchw, weight_oihw, gamma, beta, running_mean, running_var,
                 *, stride=1, eps=1e-5):
    """Wrapper: NCHW in / NCHW out, matching the PyTorch module (eval mode)."""
    n, cin, h, w = x_nchw.shape
    cout = weight_oihw.shape[0]
    ho = (h + 2 - 3) // stride + 1
    wo = (w + 2 - 3) // stride + 1

    # Fold eval-mode BN into the conv weights and a per-channel bias.
    scale = (gamma / jnp.sqrt(running_var + eps)).astype(jnp.float32)
    bias = (beta.astype(jnp.float32) - running_mean.astype(jnp.float32) * scale)
    bias = bias.reshape(cout, 1)
    w_f = weight_oihw.astype(jnp.float32) * scale[:, None, None, None]  # (Cout,Cin,3,3)

    if stride == 1:
        # 9 taps over the original (H, W) grid; flatten is a free reshape.
        offsets = [(dy, dx) for dy in (-1, 0, 1) for dx in (-1, 0, 1)]
        c_eff = cin
        x_flat = x_nchw.reshape(n, cin, h * w)
        w_taps = jnp.stack([w_f[:, :, dy + 1, dx + 1] for dy, dx in offsets])  # (9,Cout,Cin)
    elif stride == 2:
        if h % 2 or w % 2:
            raise NotImplementedError("stride=2 path requires even H and W")
        # Space-to-depth: stride-2 3x3 conv -> stride-1 conv with offsets in
        # {-1,0}^2 over the (Ho, Wo) grid and 4*Cin channels (c' = ci*4+ry*2+rx).
        offsets = [(dy, dx) for dy in (-1, 0) for dx in (-1, 0)]
        c_eff = 4 * cin
        x_s2d = x_nchw.reshape(n, cin, ho, 2, wo, 2).transpose(0, 1, 3, 5, 2, 4)
        x_flat = x_s2d.reshape(n, c_eff, ho * wo)

        def _rows(e):   # s2d kernel position e -> [(sub-position r, original tap k)]
            return [(1, 0)] if e == 0 else [(0, 1), (1, 2)]

        w_list = []
        for dy, dx in offsets:
            m = jnp.zeros((cout, cin, 2, 2), jnp.float32)
            for ry, ky in _rows(dy + 1):
                for rx, kx in _rows(dx + 1):
                    m = m.at[:, :, ry, rx].set(w_f[:, :, ky, kx])
            w_list.append(m.reshape(cout, c_eff))
        w_taps = jnp.stack(w_list)                                      # (4,Cout,4*Cin)
    else:
        # TODO(synk): only the MobileNet strides (1, 2) are implemented.
        raise NotImplementedError(f"unsupported stride {stride}")

    hw = ho * wo
    # Boundary masks (stand in for the zero padding) + flattened roll shifts.
    yy = jnp.arange(ho).reshape(ho, 1)
    xx = jnp.arange(wo).reshape(1, wo)
    masks = jnp.stack(
        [((yy + dy >= 0) & (yy + dy < ho) & (xx + dx >= 0) & (xx + dx < wo))
         .reshape(1, hw) for dy, dx in offsets]).astype(jnp.float32)    # (T,1,HW)
    shifts = tuple((-(dy * wo + dx)) % hw for dy, dx in offsets)
    t = len(offsets)

    kernel = functools.partial(_conv_bn_relu_kernel, shifts=shifts)
    out_flat = pl.pallas_call(
        kernel,
        out_shape=jax.ShapeDtypeStruct((n, cout, hw), x_nchw.dtype),
        grid_spec=pltpu.PrefetchScalarGridSpec(
            num_scalar_prefetch=0,
            grid=(n,),
            in_specs=[
                pl.BlockSpec((1, c_eff, hw), lambda i: (i, 0, 0)),
                pl.BlockSpec((t, cout, c_eff), lambda i: (0, 0, 0)),
                pl.BlockSpec((t, 1, hw), lambda i: (0, 0, 0)),
                pl.BlockSpec((cout, 1), lambda i: (0, 0)),
            ],
            out_specs=pl.BlockSpec((1, cout, hw), lambda i: (i, 0, 0)),
        ),
        compiler_params=pltpu.CompilerParams(
            dimension_semantics=("parallel",)),
    )(x_flat, w_taps, masks, bias)

    return out_flat.reshape(n, cout, ho, wo)          # free reshape back to NCHW


def _reference(x_nchw, weight_oihw, gamma, beta, running_mean, running_var,
               *, stride=1, eps=1e-5):
    y = lax.conv_general_dilated(
        x_nchw.astype(jnp.float32), weight_oihw.astype(jnp.float32),
        window_strides=(stride, stride), padding=((1, 1), (1, 1)),
        dimension_numbers=("NCHW", "OIHW", "NCHW"))
    scale = gamma / jnp.sqrt(running_var + eps)
    bias = beta - running_mean * scale
    y = y * scale.reshape(1, -1, 1, 1) + bias.reshape(1, -1, 1, 1)
    return jnp.maximum(y, 0.0)


if __name__ == "__main__":
    # _conv_bn(inp=4, oup=8, stride=1) on x of shape (2, 4, 16, 16) (NCHW).
    inp, oup = 4, 8
    N, H, W = 2, 16, 16

    key = jax.random.PRNGKey(0)
    kx, kw, kg, kb, km, kv = jax.random.split(key, 6)

    x = jax.random.normal(kx, (N, inp, H, W), dtype=jnp.float32)
    conv_w = 0.1 * jax.random.normal(kw, (oup, inp, 3, 3), dtype=jnp.float32)
    gamma = 0.5 + jax.random.uniform(kg, (oup,), dtype=jnp.float32)
    beta = 0.1 * jax.random.normal(kb, (oup,), dtype=jnp.float32)
    running_mean = 0.1 * jax.random.normal(km, (oup,), dtype=jnp.float32)
    running_var = 0.5 + jax.random.uniform(kv, (oup,), dtype=jnp.float32)

    # stride=1 path.
    out = jax.block_until_ready(
        conv_bn_relu(x, conv_w, gamma, beta, running_mean, running_var, stride=1))
    ref = _reference(x, conv_w, gamma, beta, running_mean, running_var, stride=1)
    assert out.shape == (N, oup, H, W), out.shape
    assert jnp.allclose(out, ref, atol=1e-4, rtol=1e-4), \
        float(jnp.max(jnp.abs(out - ref)))

    # stride=2 (MobileNet downsampling) via the space-to-depth path.
    H2 = W2 = 32
    x2 = jax.random.normal(kx, (N, inp, H2, W2), dtype=jnp.float32)
    out2 = jax.block_until_ready(
        conv_bn_relu(x2, conv_w, gamma, beta, running_mean, running_var, stride=2))
    ref2 = _reference(x2, conv_w, gamma, beta, running_mean, running_var, stride=2)
    assert out2.shape == (N, oup, H2 // 2, W2 // 2), out2.shape
    assert jnp.allclose(out2, ref2, atol=1e-4, rtol=1e-4), \
        float(jnp.max(jnp.abs(out2 - ref2)))

    print("KERNEL_OK")
</pallas_src>

<mosaic_0001>
module attributes {stable_mosaic.version = 11 : i64} {
  func.func @_conv_bn_relu_kernel(%arg0: i32, %arg1: memref<1x4x256xf32, #tpu.memory_space<vmem>>, %arg2: memref<9x8x4xf32, #tpu.memory_space<vmem>>, %arg3: memref<9x1x256xf32, #tpu.memory_space<vmem>>, %arg4: memref<8x1xf32, #tpu.memory_space<vmem>>, %arg5: memref<1x8x256xf32, #tpu.memory_space<vmem>>) attributes {dimension_semantics = [#tpu.dimension_semantics<parallel>], iteration_bounds = array<i64: 2>, scalar_prefetch = 0 : i64, scratch_operands = 0 : i64, tpu.core_type = #tpu.core_type<tc>, window_params = [{transform_indices = @transform_0, window_bounds = array<i64: 1, 4, 256>}, {pipeline_mode = #tpu.pipeline_mode<synchronous>, transform_indices = @transform_1, window_bounds = array<i64: 9, 8, 4>}, {pipeline_mode = #tpu.pipeline_mode<synchronous>, transform_indices = @transform_2, window_bounds = array<i64: 9, 1, 256>}, {pipeline_mode = #tpu.pipeline_mode<synchronous>, transform_indices = @transform_3, window_bounds = array<i64: 8, 1>}, {transform_indices = @transform_4, window_bounds = array<i64: 1, 8, 256>}]} {
    %c0 = arith.constant 0 : index
    %c0_0 = arith.constant 0 : index
    %c0_1 = arith.constant 0 : index
    %0 = vector.load %arg1[%c0, %c0_0, %c0_1] : memref<1x4x256xf32, #tpu.memory_space<vmem>>, vector<1x4x256xf32>
    %1 = vector.shape_cast %0 : vector<1x4x256xf32> to vector<4x256xf32>
    %cst = arith.constant 0.000000e+00 : f32
    %2 = vector.broadcast %cst : f32 to vector<8x256xf32>
    %c17_i32 = arith.constant 17 : i32
    %3 = tpu.dynamic_rotate %1 by %c17_i32 dim 1 : vector<4x256xf32>, i32 -> vector<4x256xf32>
    %c0_2 = arith.constant 0 : index
    %c0_3 = arith.constant 0 : index
    %c0_4 = arith.constant 0 : index
    %4 = vector.load %arg3[%c0_2, %c0_3, %c0_4] : memref<9x1x256xf32, #tpu.memory_space<vmem>>, vector<1x1x256xf32>
    %5 = vector.shape_cast %4 : vector<1x1x256xf32> to vector<1x256xf32>
    %6 = vector.broadcast %5 : vector<1x256xf32> to vector<4x256xf32>
    %7 = arith.mulf %3, %6 : vector<4x256xf32>
    %c0_5 = arith.constant 0 : index
    %c0_6 = arith.constant 0 : index
    %c0_7 = arith.constant 0 : index
    %8 = vector.load %arg2[%c0_5, %c0_6, %c0_7] : memref<9x8x4xf32, #tpu.memory_space<vmem>>, vector<1x8x4xf32>
    %9 = vector.shape_cast %8 : vector<1x8x4xf32> to vector<8x4xf32>
    %cst_8 = arith.constant dense<0.000000e+00> : vector<8x256xf32>
    %10 = tpu.matmul %9, %7, %cst_8 {dimension_numbers = #tpu.dot_dimension_numbers<[1], [0], [0], [1], [0, 0, 1, 1], [], []>} : vector<8x4xf32>, vector<4x256xf32>, vector<8x256xf32> -> vector<8x256xf32>
    %11 = arith.addf %2, %10 : vector<8x256xf32>
    %c16_i32 = arith.constant 16 : i32
    %12 = tpu.dynamic_rotate %1 by %c16_i32 dim 1 : vector<4x256xf32>, i32 -> vector<4x256xf32>
    %c1 = arith.constant 1 : index
    %c0_9 = arith.constant 0 : index
    %c0_10 = arith.constant 0 : index
    %13 = vector.load %arg3[%c1, %c0_9, %c0_10] : memref<9x1x256xf32, #tpu.memory_space<vmem>>, vector<1x1x256xf32>
    %14 = vector.shape_cast %13 : vector<1x1x256xf32> to vector<1x256xf32>
    %15 = vector.broadcast %14 : vector<1x256xf32> to vector<4x256xf32>
    %16 = arith.mulf %12, %15 : vector<4x256xf32>
    %c1_11 = arith.constant 1 : index
    %c0_12 = arith.constant 0 : index
    %c0_13 = arith.constant 0 : index
    %17 = vector.load %arg2[%c1_11, %c0_12, %c0_13] : memref<9x8x4xf32, #tpu.memory_space<vmem>>, vector<1x8x4xf32>
    %18 = vector.shape_cast %17 : vector<1x8x4xf32> to vector<8x4xf32>
    %cst_14 = arith.constant dense<0.000000e+00> : vector<8x256xf32>
    %19 = tpu.matmul %18, %16, %cst_14 {dimension_numbers = #tpu.dot_dimension_numbers<[1], [0], [0], [1], [0, 0, 1, 1], [], []>} : vector<8x4xf32>, vector<4x256xf32>, vector<8x256xf32> -> vector<8x256xf32>
    %20 = arith.addf %11, %19 : vector<8x256xf32>
    %c15_i32 = arith.constant 15 : i32
    %21 = tpu.dynamic_rotate %1 by %c15_i32 dim 1 : vector<4x256xf32>, i32 -> vector<4x256xf32>
    %c2 = arith.constant 2 : index
    %c0_15 = arith.constant 0 : index
    %c0_16 = arith.constant 0 : index
    %22 = vector.load %arg3[%c2, %c0_15, %c0_16] : memref<9x1x256xf32, #tpu.memory_space<vmem>>, vector<1x1x256xf32>
    %23 = vector.shape_cast %22 : vector<1x1x256xf32> to vector<1x256xf32>
    %24 = vector.broadcast %23 : vector<1x256xf32> to vector<4x256xf32>
    %25 = arith.mulf %21, %24 : vector<4x256xf32>
    %c2_17 = arith.constant 2 : index
    %c0_18 = arith.constant 0 : index
    %c0_19 = arith.constant 0 : index
    %26 = vector.load %arg2[%c2_17, %c0_18, %c0_19] : memref<9x8x4xf32, #tpu.memory_space<vmem>>, vector<1x8x4xf32>
    %27 = vector.shape_cast %26 : vector<1x8x4xf32> to vector<8x4xf32>
    %cst_20 = arith.constant dense<0.000000e+00> : vector<8x256xf32>
    %28 = tpu.matmul %27, %25, %cst_20 {dimension_numbers = #tpu.dot_dimension_numbers<[1], [0], [0], [1], [0, 0, 1, 1], [], []>} : vector<8x4xf32>, vector<4x256xf32>, vector<8x256xf32> -> vector<8x256xf32>
    %29 = arith.addf %20, %28 : vector<8x256xf32>
    %c1_i32 = arith.constant 1 : i32
    %30 = tpu.dynamic_rotate %1 by %c1_i32 dim 1 : vector<4x256xf32>, i32 -> vector<4x256xf32>
    %c3 = arith.constant 3 : index
    %c0_21 = arith.constant 0 : index
    %c0_22 = arith.constant 0 : index
    %31 = vector.load %arg3[%c3, %c0_21, %c0_22] : memref<9x1x256xf32, #tpu.memory_space<vmem>>, vector<1x1x256xf32>
    %32 = vector.shape_cast %31 : vector<1x1x256xf32> to vector<1x256xf32>
    %33 = vector.broadcast %32 : vector<1x256xf32> to vector<4x256xf32>
    %34 = arith.mulf %30, %33 : vector<4x256xf32>
    %c3_23 = arith.constant 3 : index
    %c0_24 = arith.constant 0 : index
    %c0_25 = arith.constant 0 : index
    %35 = vector.load %arg2[%c3_23, %c0_24, %c0_25] : memref<9x8x4xf32, #tpu.memory_space<vmem>>, vector<1x8x4xf32>
    %36 = vector.shape_cast %35 : vector<1x8x4xf32> to vector<8x4xf32>
    %cst_26 = arith.constant dense<0.000000e+00> : vector<8x256xf32>
    %37 = tpu.matmul %36, %34, %cst_26 {dimension_numbers = #tpu.dot_dimension_numbers<[1], [0], [0], [1], [0, 0, 1, 1], [], []>} : vector<8x4xf32>, vector<4x256xf32>, vector<8x256xf32> -> vector<8x256xf32>
    %38 = arith.addf %29, %37 : vector<8x256xf32>
    %c4 = arith.constant 4 : index
    %c0_27 = arith.constant 0 : index
    %c0_28 = arith.constant 0 : index
    %39 = vector.load %arg2[%c4, %c0_27, %c0_28] : memref<9x8x4xf32, #tpu.memory_space<vmem>>, vector<1x8x4xf32>
    %40 = vector.shape_cast %39 : vector<1x8x4xf32> to vector<8x4xf32>
    %cst_29 = arith.constant dense<0.000000e+00> : vector<8x256xf32>
    %41 = tpu.matmul %40, %1, %cst_29 {dimension_numbers = #tpu.dot_dimension_numbers<[1], [0], [0], [1], [0, 0, 1, 1], [], []>} : vector<8x4xf32>, vector<4x256xf32>, vector<8x256xf32> -> vector<8x256xf32>
    %42 = arith.addf %38, %41 : vector<8x256xf32>
    %c255_i32 = arith.constant 255 : i32
    %43 = tpu.dynamic_rotate %1 by %c255_i32 dim 1 : vector<4x256xf32>, i32 -> vector<4x256xf32>
    %c5 = arith.constant 5 : index
    %c0_30 = arith.constant 0 : index
    %c0_31 = arith.constant 0 : index
    %44 = vector.load %arg3[%c5, %c0_30, %c0_31] : memref<9x1x256xf32, #tpu.memory_space<vmem>>, vector<1x1x256xf32>
    %45 = vector.shape_cast %44 : vector<1x1x256xf32> to vector<1x256xf32>
    %46 = vector.broadcast %45 : vector<1x256xf32> to vector<4x256xf32>
    %47 = arith.mulf %43, %46 : vector<4x256xf32>
    %c5_32 = arith.constant 5 : index
    %c0_33 = arith.constant 0 : index
    %c0_34 = arith.constant 0 : index
    %48 = vector.load %arg2[%c5_32, %c0_33, %c0_34] : memref<9x8x4xf32, #tpu.memory_space<vmem>>, vector<1x8x4xf32>
    %49 = vector.shape_cast %48 : vector<1x8x4xf32> to vector<8x4xf32>
    %cst_35 = arith.constant dense<0.000000e+00> : vector<8x256xf32>
    %50 = tpu.matmul %49, %47, %cst_35 {dimension_numbers = #tpu.dot_dimension_numbers<[1], [0], [0], [1], [0, 0, 1, 1], [], []>} : vector<8x4xf32>, vector<4x256xf32>, vector<8x256xf32> -> vector<8x256xf32>
    %51 = arith.addf %42, %50 : vector<8x256xf32>
    %c241_i32 = arith.constant 241 : i32
    %52 = tpu.dynamic_rotate %1 by %c241_i32 dim 1 : vector<4x256xf32>, i32 -> vector<4x256xf32>
    %c6 = arith.constant 6 : index
    %c0_36 = arith.constant 0 : index
    %c0_37 = arith.constant 0 : index
    %53 = vector.load %arg3[%c6, %c0_36, %c0_37] : memref<9x1x256xf32, #tpu.memory_space<vmem>>, vector<1x1x256xf32>
    %54 = vector.shape_cast %53 : vector<1x1x256xf32> to vector<1x256xf32>
    %55 = vector.broadcast %54 : vector<1x256xf32> to vector<4x256xf32>
    %56 = arith.mulf %52, %55 : vector<4x256xf32>
    %c6_38 = arith.constant 6 : index
    %c0_39 = arith.constant 0 : index
    %c0_40 = arith.constant 0 : index
    %57 = vector.load %arg2[%c6_38, %c0_39, %c0_40] : memref<9x8x4xf32, #tpu.memory_space<vmem>>, vector<1x8x4xf32>
    %58 = vector.shape_cast %57 : vector<1x8x4xf32> to vector<8x4xf32>
    %cst_41 = arith.constant dense<0.000000e+00> : vector<8x256xf32>
    %59 = tpu.matmul %58, %56, %cst_41 {dimension_numbers = #tpu.dot_dimension_numbers<[1], [0], [0], [1], [0, 0, 1, 1], [], []>} : vector<8x4xf32>, vector<4x256xf32>, vector<8x256xf32> -> vector<8x256xf32>
    %60 = arith.addf %51, %59 : vector<8x256xf32>
    %c240_i32 = arith.constant 240 : i32
    %61 = tpu.dynamic_rotate %1 by %c240_i32 dim 1 : vector<4x256xf32>, i32 -> vector<4x256xf32>
    %c7 = arith.constant 7 : index
    %c0_42 = arith.constant 0 : index
    %c0_43 = arith.constant 0 : index
    %62 = vector.load %arg3[%c7, %c0_42, %c0_43] : memref<9x1x256xf32, #tpu.memory_space<vmem>>, vector<1x1x256xf32>
    %63 = vector.shape_cast %62 : vector<1x1x256xf32> to vector<1x256xf32>
    %64 = vector.broadcast %63 : vector<1x256xf32> to vector<4x256xf32>
    %65 = arith.mulf %61, %64 : vector<4x256xf32>
    %c7_44 = arith.constant 7 : index
    %c0_45 = arith.constant 0 : index
    %c0_46 = arith.constant 0 : index
    %66 = vector.load %arg2[%c7_44, %c0_45, %c0_46] : memref<9x8x4xf32, #tpu.memory_space<vmem>>, vector<1x8x4xf32>
    %67 = vector.shape_cast %66 : vector<1x8x4xf32> to vector<8x4xf32>
    %cst_47 = arith.constant dense<0.000000e+00> : vector<8x256xf32>
    %68 = tpu.matmul %67, %65, %cst_47 {dimension_numbers = #tpu.dot_dimension_numbers<[1], [0], [0], [1], [0, 0, 1, 1], [], []>} : vector<8x4xf32>, vector<4x256xf32>, vector<8x256xf32> -> vector<8x256xf32>
    %69 = arith.addf %60, %68 : vector<8x256xf32>
    %c239_i32 = arith.constant 239 : i32
    %70 = tpu.dynamic_rotate %1 by %c239_i32 dim 1 : vector<4x256xf32>, i32 -> vector<4x256xf32>
    %c8 = arith.constant 8 : index
    %c0_48 = arith.constant 0 : index
    %c0_49 = arith.constant 0 : index
    %71 = vector.load %arg3[%c8, %c0_48, %c0_49] : memref<9x1x256xf32, #tpu.memory_space<vmem>>, vector<1x1x256xf32>
    %72 = vector.shape_cast %71 : vector<1x1x256xf32> to vector<1x256xf32>
    %73 = vector.broadcast %72 : vector<1x256xf32> to vector<4x256xf32>
    %74 = arith.mulf %70, %73 : vector<4x256xf32>
    %c8_50 = arith.constant 8 : index
    %c0_51 = arith.constant 0 : index
    %c0_52 = arith.constant 0 : index
    %75 = vector.load %arg2[%c8_50, %c0_51, %c0_52] : memref<9x8x4xf32, #tpu.memory_space<vmem>>, vector<1x8x4xf32>
    %76 = vector.shape_cast %75 : vector<1x8x4xf32> to vector<8x4xf32>
    %cst_53 = arith.constant dense<0.000000e+00> : vector<8x256xf32>
    %77 = tpu.matmul %76, %74, %cst_53 {dimension_numbers = #tpu.dot_dimension_numbers<[1], [0], [0], [1], [0, 0, 1, 1], [], []>} : vector<8x4xf32>, vector<4x256xf32>, vector<8x256xf32> -> vector<8x256xf32>
    %78 = arith.addf %69, %77 : vector<8x256xf32>
    %c0_54 = arith.constant 0 : index
    %c0_55 = arith.constant 0 : index
    %79 = vector.load %arg4[%c0_54, %c0_55] : memref<8x1xf32, #tpu.memory_space<vmem>>, vector<8x1xf32>
    %80 = vector.broadcast %79 : vector<8x1xf32> to vector<8x256xf32>
    %81 = arith.addf %78, %80 : vector<8x256xf32>
    %cst_56 = arith.constant 0.000000e+00 : f32
    %82 = vector.broadcast %cst_56 : f32 to vector<8x256xf32>
    %83 = arith.maximumf %81, %82 : vector<8x256xf32>
    %c0_57 = arith.constant 0 : index
    %c0_58 = arith.constant 0 : index
    %c0_59 = arith.constant 0 : index
    %84 = vector.load %arg5[%c0_57, %c0_58, %c0_59] : memref<1x8x256xf32, #tpu.memory_space<vmem>>, vector<1x8x256xf32>
    %85 = vector.shape_cast %84 : vector<1x8x256xf32> to vector<8x256xf32>
    %86 = vector.shape_cast %83 : vector<8x256xf32> to vector<1x8x256xf32>
    tpu.vector_store %arg5[%c0_57, %c0_58, %c0_59], %86 {strides = array<i32>} : memref<1x8x256xf32, #tpu.memory_space<vmem>>, vector<1x8x256xf32>,
    return
  }
  func.func @transform_0(%arg0: i32) -> (i32, i32, i32) {
    %c0_i32 = arith.constant 0 : i32
    %c0_i32_0 = arith.constant 0 : i32
    %c0_i32_1 = arith.constant 0 : i32
    return %arg0, %c0_i32, %c0_i32_0 : i32, i32, i32
  }
  func.func @transform_1(%arg0: i32) -> (i32, i32, i32) {
    %c0_i32 = arith.constant 0 : i32
    %c0_i32_0 = arith.constant 0 : i32
    %c0_i32_1 = arith.constant 0 : i32
    %c0_i32_2 = arith.constant 0 : i32
    return %c0_i32, %c0_i32_0, %c0_i32_1 : i32, i32, i32
  }
  func.func @transform_2(%arg0: i32) -> (i32, i32, i32) {
    %c0_i32 = arith.constant 0 : i32
    %c0_i32_0 = arith.constant 0 : i32
    %c0_i32_1 = arith.constant 0 : i32
    %c0_i32_2 = arith.constant 0 : i32
    return %c0_i32, %c0_i32_0, %c0_i32_1 : i32, i32, i32
  }
  func.func @transform_3(%arg0: i32) -> (i32, i32) {
    %c0_i32 = arith.constant 0 : i32
    %c0_i32_0 = arith.constant 0 : i32
    %c0_i32_1 = arith.constant 0 : i32
    return %c0_i32, %c0_i32_0 : i32, i32
  }
  func.func @transform_4(%arg0: i32) -> (i32, i32, i32) {
    %c0_i32 = arith.constant 0 : i32
    %c0_i32_0 = arith.constant 0 : i32
    %c0_i32_1 = arith.constant 0 : i32
    return %arg0, %c0_i32, %c0_i32_0 : i32, i32, i32
  }
}

</mosaic_0001>

<llo_original>
// kernel: tpu_custom_call.1
$region0: #{tpu_custom_call.1}
  #allocation0 [shape = 'u32[]', space=smem, size = 0x4, offset = 0x4, fixed_abs, tag = 'smem constant byte address 0x4 - core index']
  #allocation1 [shape = 'u32[72,128]{1,0:T(1,128)}', space=vmem, size = 0x9000, scoped, tag = 'internal scratch']
  %s0 = inlined_call_operand.vmem [shape: f32[2,4,256], index: 0, kind: input, shape index: {}]
  %s1 = inlined_call_operand.vmem [shape: f32[9,8,4], index: 1, kind: input, shape index: {}]
  %s2 = inlined_call_operand.vmem [shape: f32[9,1,256], index: 2, kind: input, shape index: {}]
  %s3 = inlined_call_operand.vmem [shape: f32[8,1], index: 3, kind: input, shape index: {}]
  %s4 = inlined_call_operand.hbm [shape: f32[2,8,256], index: 4, kind: output, shape index: {}]
  %s5 = sld [smem:[#allocation0]]
  $region49: #{tpu_custom_call.1} parent=0
    _
  %s7 = ssub.s32 1, %s5
  %s8 = scalar_select 0, %s7, %s5
  $region1: #{tpu_custom_call.1} parent=0
    #allocation2 [shape = 'u8[16384]{0}', space=vmem, size = 0x4000, scoped, tag = 'output window, operand 0']
    #allocation3 [shape = 's32[2]{0}', space=sflag, size = 0x8, scoped, tag = 'scoped memory for tpu_custom_call.1']
    %9 = vsyncpa [#allocation3], 0
    %s10 = scalar_lea.sflag [#allocation3], 1
    %11 = vsyncpa %s10, 0
    loop: start=0, step=1, limit=4
    $region2: #{tpu_custom_call.1} parent=1 // loop_pre_header
      _
    $region3: #{tpu_custom_call.1} parent=1 // loop_header
      %s13 = sphi 0, %s17
      %p14 = scmp.ge.s32.totalorder %s13, 4
      %s23 = sphi 0, %s25
      %s26 = sphi 0, %s23
      %s27 = sphi 0, %s26
      %s43 = sphi 0, %s27
      %s47 = sphi 0, %s47
      %s49 = sphi 0, %s47
      %s50 = sphi 0, %s49
      %s64 = sphi 0, %s50
      %s68 = sphi 0, %s68
      %s70 = sphi 0, %s68
      %s71 = sphi 0, %s70
      %s85 = sphi 0, %s71
      %s89 = sphi 0, %s89
      %s91 = sphi 0, %s89
      %s92 = sphi 0, %s91
      %s106 = sphi 0, %s92
      %s112 = sphi 0, %s114
      %s115 = sphi 0, %s112
      %s116 = sphi 0, %s115
      %s132 = sphi 0, %s116
    $region4: #{tpu_custom_call.1} parent=1 // loop_header_branch
      %16 = sbr.rel (%p14) target = $region8
    $region5: #{tpu_custom_call.1} parent=1 // loop_body
      %s18 = ssub.s32 %s13, 1
      %s19 = ssub.s32 %s13, 2
      %s20 = sadd.s32 %s13, 1
      %s21 = ssub.s32 %s13, %s20
      %p22 = scmp.eq.s32.totalorder %s21, 0
      %s24 = sadd.s32 %s23, 1
      %s25 = scalar_select %p22, %s23, %s24
      %p28 = pneg %p22
      %p29 = scmp.eq.s32.totalorder %s13, 1
      %p30 = por %p28, %p29
      %p31 = scmp.ne.s32.totalorder %s23, %s26
      %p32 = scmp.eq.s32.totalorder %s13, 0
      %p33 = por %p31, %p32
      %p34 = scmp.ne.s32.totalorder %s23, %s26
      %p35 = scmp.eq.s32.totalorder %s18, 1
      %p36 = por %p34, %p35
      %p37 = scmp.ne.s32.totalorder %s26, %s27
      %p38 = scmp.eq.s32.totalorder %s18, 0
      %p39 = por %p37, %p38
      %p40 = scmp.ne.s32.totalorder %s26, %s27
      %p41 = scmp.eq.s32.totalorder %s19, 1
      %p42 = por %p40, %p41
      %p44 = scmp.ne.s32.totalorder %s27, %s43
      %p45 = scmp.eq.s32.totalorder %s19, 0
      %p46 = por %p44, %p45
      %s48 = sadd.s32 %s47, 1
      %p51 = scmp.eq.s32.totalorder %s13, 1
      %p52 = scmp.ne.s32.totalorder %s47, %s49
      %p53 = scmp.eq.s32.totalorder %s13, 0
      %p54 = por %p52, %p53
      %p55 = scmp.ne.s32.totalorder %s47, %s49
      %p56 = scmp.eq.s32.totalorder %s18, 1
      %p57 = por %p55, %p56
      %p58 = scmp.ne.s32.totalorder %s49, %s50
      %p59 = scmp.eq.s32.totalorder %s18, 0
      %p60 = por %p58, %p59
      %p61 = scmp.ne.s32.totalorder %s49, %s50
      %p62 = scmp.eq.s32.totalorder %s19, 1
      %p63 = por %p61, %p62
      %p65 = scmp.ne.s32.totalorder %s50, %s64
      %p66 = scmp.eq.s32.totalorder %s19, 0
      %p67 = por %p65, %p66
      %s69 = sadd.s32 %s68, 1
      %p72 = scmp.eq.s32.totalorder %s13, 1
      %p73 = scmp.ne.s32.totalorder %s68, %s70
      %p74 = scmp.eq.s32.totalorder %s13, 0
      %p75 = por %p73, %p74
      %p76 = scmp.ne.s32.totalorder %s68, %s70
      %p77 = scmp.eq.s32.totalorder %s18, 1
      %p78 = por %p76, %p77
      %p79 = scmp.ne.s32.totalorder %s70, %s71
      %p80 = scmp.eq.s32.totalorder %s18, 0
      %p81 = por %p79, %p80
      %p82 = scmp.ne.s32.totalorder %s70, %s71
      %p83 = scmp.eq.s32.totalorder %s19, 1
      %p84 = por %p82, %p83
      %p86 = scmp.ne.s32.totalorder %s71, %s85
      %p87 = scmp.eq.s32.totalorder %s19, 0
      %p88 = por %p86, %p87
      %s90 = sadd.s32 %s89, 1
      %p93 = scmp.eq.s32.totalorder %s13, 1
      %p94 = scmp.ne.s32.totalorder %s89, %s91
      %p95 = scmp.eq.s32.totalorder %s13, 0
      %p96 = por %p94, %p95
      %p97 = scmp.ne.s32.totalorder %s89, %s91
      %p98 = scmp.eq.s32.totalorder %s18, 1
      %p99 = por %p97, %p98
      %p100 = scmp.ne.s32.totalorder %s91, %s92
      %p101 = scmp.eq.s32.totalorder %s18, 0
      %p102 = por %p100, %p101
      %p103 = scmp.ne.s32.totalorder %s91, %s92
      %p104 = scmp.eq.s32.totalorder %s19, 1
      %p105 = por %p103, %p104
      %p107 = scmp.ne.s32.totalorder %s92, %s106
      %p108 = scmp.eq.s32.totalorder %s19, 0
      %p109 = por %p107, %p108
      %s110 = ssub.s32 %s13, %s20
      %p111 = scmp.eq.s32.totalorder %s110, 0
      %s113 = sadd.s32 %s112, 1
      %s114 = scalar_select %p111, %s112, %s113
      %p117 = pneg %p111
      %p118 = scmp.eq.s32.totalorder %s13, 1
      %p119 = por %p117, %p118
      %p120 = scmp.ne.s32.totalorder %s112, %s115
      %p121 = scmp.eq.s32.totalorder %s13, 0
      %p122 = por %p120, %p121
      %p123 = scmp.ne.s32.totalorder %s112, %s115
      %p124 = scmp.eq.s32.totalorder %s18, 1
      %p125 = por %p123, %p124
      %p126 = scmp.ne.s32.totalorder %s115, %s116
      %p127 = scmp.eq.s32.totalorder %s18, 0
      %p128 = por %p126, %p127
      %p129 = scmp.ne.s32.totalorder %s115, %s116
      %p130 = scmp.eq.s32.totalorder %s19, 1
      %p131 = por %p129, %p130
      %p133 = scmp.ne.s32.totalorder %s116, %s132
      %p134 = scmp.eq.s32.totalorder %s19, 0
      %p135 = por %p133, %p134
      %p136 = scmp.le.s32.totalorder 1, %s13
      %p137 = scmp.lt.s32.totalorder %s13, 3
      %p138 = pnand %p136, %p137
      %p139 = pneg %p138
      // Predicated region
      $region9: #{tpu_custom_call.1} parent=5 // pred_check
        _
      $region10: #{tpu_custom_call.1} parent=5 // pred_check_branch
        %141 = sbr.rel (%p138) target = $region12
      $region11: #{tpu_custom_call.1} parent=5 // pred_region
        %s142 = ssub.s32 %s13, 1
        // Predicated region
        $region13: #{tpu_custom_call.1} parent=11 // pred_check
          %p143 = pneg %p60
        $region14: #{tpu_custom_call.1} parent=11 // pred_check_branch
          %145 = sbr.rel (%p143) target = $region16
        $region15: #{tpu_custom_call.1} parent=11 // pred_region
          _
        $region16: #{tpu_custom_call.1} parent=11 // pred_fallthru
          _
        // Predicated region
        $region17: #{tpu_custom_call.1} parent=11 // pred_check
          %p146 = pneg %p81
        $region18: #{tpu_custom_call.1} parent=11 // pred_check_branch
          %148 = sbr.rel (%p146) target = $region20
        $region19: #{tpu_custom_call.1} parent=11 // pred_region
          _
        $region20: #{tpu_custom_call.1} parent=11 // pred_fallthru
          _
        // Predicated region
        $region21: #{tpu_custom_call.1} parent=11 // pred_check
          %p149 = pneg %p102
        $region22: #{tpu_custom_call.1} parent=11 // pred_check_branch
          %151 = sbr.rel (%p149) target = $region24
        $region23: #{tpu_custom_call.1} parent=11 // pred_region
          _
        $region24: #{tpu_custom_call.1} parent=11 // pred_fallthru
          _
      $region12: #{tpu_custom_call.1} parent=5 // pred_fallthru
        _
      %p152 = scmp.lt.s32.totalorder %s13, 2
      // Predicated region
      $region25: #{tpu_custom_call.1} parent=5 // pred_check
        %p153 = pneg %p152
      $region26: #{tpu_custom_call.1} parent=5 // pred_check_branch
        %155 = sbr.rel (%p153) target = $region28
      $region27: #{tpu_custom_call.1} parent=5 // pred_region
        // Predicated region
        $region29: #{tpu_custom_call.1} parent=27 // pred_check
          %p156 = pneg %p33
        $region30: #{tpu_custom_call.1} parent=27 // pred_check_branch
          %158 = sbr.rel (%p156) target = $region32
        $region31: #{tpu_custom_call.1} parent=27 // pred_region
          %p159 = scmp.lt.s32.totalorder %s13, 1
          %s160 = scalar_select %p159, %s13, 1
          %s161 = smul.addr %s160, 2
          %s162 = smul.addr %s161, 4
          %s163 = scalar_lea.vmem %s0, %s162
        $region32: #{tpu_custom_call.1} parent=27 // pred_fallthru
          _
      $region28: #{tpu_custom_call.1} parent=5 // pred_fallthru
        _
      %p164 = scmp.le.s32.totalorder 1, %s13
      %p165 = scmp.lt.s32.totalorder %s13, 3
      %p166 = pnand %p164, %p165
      %p167 = pneg %p166
      // Predicated region
      $region33: #{tpu_custom_call.1} parent=5 // pred_check
        _
      $region34: #{tpu_custom_call.1} parent=5 // pred_check_branch
        %169 = sbr.rel (%p166) target = $region36
      $region35: #{tpu_custom_call.1} parent=5 // pred_region
        %s170 = ssub.s32 %s13, 1
        %p171 = scmp.lt.s32.totalorder %s18, 1
        %s172 = scalar_select %p171, %s18, 1
        %s173 = smul.addr %s172, 2
        %s174 = smul.addr %s173, 4
        %s175 = scalar_lea.vmem %s0, %s174
        %p176 = pneg %p39
        %p177 = pneg %p36
        %p178 = pneg %p60
        %p179 = pneg %p57
        %p180 = pneg %p81
        %p181 = pneg %p78
        %p182 = pneg %p102
        %p183 = pneg %p99
        %p184 = pneg %p128
        %p185 = pneg %p125
        %s186 = sand.u32 %s115, 1
        %s187 = scalar_lea.sflag [#allocation3], %s186
        %s188 = sand.u32 %s115, 1
        %s189 = smul.addr %s188, 16
        %s190 = scalar_lea.vmem [#allocation2], %s189
        %p191 = scmp.lt.s32.totalorder %s18, 1
        %s192 = scalar_select %p191, %s18, 1
        %s193 = smul.addr %s192, 2
        %s194 = smul.addr %s193, 4
        %s195 = scalar_lea.vmem %s0, %s194
        %v196 = vld [vmem:[%s195] sm:$0xff]
        %198 = vst [vmem:[#allocation1] ss:$2 sm:$0xff] %v196
        %v199 = vld.sshfl [vmem:[#allocation1] sm:$0xff pattern:$0x75316420]
        %v200 = vld.sshfl [vmem:[#allocation1 + $0x8] sm:$0xff pattern:$0x75316420]
        %203 = vrot.lane.b32.xlu0 %v199, 17
        %v204 = vpop.permute.xlu0 %203
        %205 = vrot.lane.b32.xlu0 %v200, 17
        %v206 = vpop.permute.xlu0 %205
        %v207 = vlaneseq
        %v208 = vand.u32 %v207, 127
        %vm209 = vcmp.lt.s32.totalorder %v208, 17
        %v210 = vsel %vm209, %v204, %v206
        %v211 = vsel %vm209, %v206, %v204
        %v212 = vld [vmem:[%s2] sm:$0x3]
        %v214 = vperm.slane %v212, 0
        %v215 = vperm.slane %v212, 1
        %v218 = vmul.f32 %v211, %v214
        %v219 = vmul.f32 %v210, %v215
        %v220 = vld [vmem:[%s1] sm:$0xff]
        %221 = vst [vmem:[#allocation1] ss:$2 sm:$0xff] %v196
        %v222 = vld.sshfl [vmem:[#allocation1] sm:$0xff pattern:$0x75316420]
        %v223 = vld.sshfl [vmem:[#allocation1 + $0x8] sm:$0xff pattern:$0x75316420]
        %226 = vrot.lane.b32.xlu0 %v222, 16
        %v227 = vpop.permute.xlu0 %226
        %228 = vrot.lane.b32.xlu0 %v223, 16
        %v229 = vpop.permute.xlu0 %228
        %vm230 = vcmp.lt.s32.totalorder %v208, 16
        %v231 = vsel %vm230, %v227, %v229
        %v232 = vsel %vm230, %v229, %v227
        %s233 = scalar_lea.vmem %s2, 2
        %v234 = vld [vmem:[%s233] sm:$0x3]
        %v236 = vperm.slane %v234, 0
        %v237 = vperm.slane %v234, 1
        %v240 = vmul.f32 %v232, %v236
        %v241 = vmul.f32 %v231, %v237
        %s242 = scalar_lea.vmem %s1, 8
        %v243 = vld [vmem:[%s242] sm:$0xff]
        %vm244 = vcmask 31744
        %v246 = vsel %vm244, %v243, 0
        %vm248 = vcmask 1043456
        %v250 = vsel %vm248, %v240, 0
        %v253 = vsel %vm248, %v241, 0
        %255 = vmatpush.msra.mxu0 0.0
        %256 = vmatpush.msra.mxu0 0.0
        %257 = vmatpush.msra.mxu0 0.0
        %258 = vmatpush.msra.mxu0 0.0
        %259 = vmatpush.msra.mxu0 0.0
        %260 = vmatpush.msra.mxu0 0.0
        %261 = vmatpush.msra.mxu0 0.0
        %262 = vmatpush.msra.mxu0 0.0
        %263 = vmatpush.msra.mxu0 0.0
        %264 = vmatpush.msra.mxu0 0.0
        %265 = vmatpush.msra.mxu0 0.0
        %266 = vmatpush.msra.mxu0 0.0
        %267 = vmatpush.msra.mxu0 0.0
        %268 = vmatpush.msra.mxu0 0.0
        %269 = vmatpush.msra.mxu0 0.0
        %270 = vmatpush.msra.mxu0 %v250
        %271 = vmatmul.f32.gmra.mxu0 %v246
        %v272 = vpop.f32.mrf.mxu0
        %v273 = vadd.f32 0.0, %v272
        %274 = vdwg.mxu0
        %275 = vmatpush.msra.mxu0 0.0
        %276 = vmatpush.msra.mxu0 0.0
        %277 = vmatpush.msra.mxu0 0.0
        %278 = vmatpush.msra.mxu0 0.0
        %279 = vmatpush.msra.mxu0 0.0
        %280 = vmatpush.msra.mxu0 0.0
        %281 = vmatpush.msra.mxu0 0.0
        %282 = vmatpush.msra.mxu0 0.0
        %283 = vmatpush.msra.mxu0 0.0
        %284 = vmatpush.msra.mxu0 0.0
        %285 = vmatpush.msra.mxu0 0.0
        %286 = vmatpush.msra.mxu0 0.0
        %287 = vmatpush.msra.mxu0 0.0
        %288 = vmatpush.msra.mxu0 0.0
        %289 = vmatpush.msra.mxu0 0.0
        %290 = vmatpush.msra.mxu0 %v253
        %291 = vmatmul.f32.gmra.mxu0 %v246
        %v292 = vpop.f32.mrf.mxu0
        %v293 = vadd.f32 0.0, %v292
        %294 = vdwg.mxu0
        %v296 = vsel %vm244, %v220, 0
        %v299 = vsel %vm248, %v218, 0
        %v302 = vsel %vm248, %v219, 0
        %304 = vmatpush.msra.mxu0 0.0
        %305 = vmatpush.msra.mxu0 0.0
        %306 = vmatpush.msra.mxu0 0.0
        %307 = vmatpush.msra.mxu0 0.0
        %308 = vmatpush.msra.mxu0 0.0
        %309 = vmatpush.msra.mxu0 0.0
        %310 = vmatpush.msra.mxu0 0.0
        %311 = vmatpush.msra.mxu0 0.0
        %312 = vmatpush.msra.mxu0 0.0
        %313 = vmatpush.msra.mxu0 0.0
        %314 = vmatpush.msra.mxu0 0.0
        %315 = vmatpush.msra.mxu0 0.0
        %316 = vmatpush.msra.mxu0 0.0
        %317 = vmatpush.msra.mxu0 0.0
        %318 = vmatpush.msra.mxu0 0.0
        %319 = vmatpush.msra.mxu0 %v299
        %320 = vmatmul.f32.gmra.mxu0 %v296
        %v321 = vpop.f32.mrf.mxu0
        %v322 = vadd.f32 %v273, %v321
        %323 = vdwg.mxu0
        %324 = vmatpush.msra.mxu0 0.0
        %325 = vmatpush.msra.mxu0 0.0
        %326 = vmatpush.msra.mxu0 0.0
        %327 = vmatpush.msra.mxu0 0.0
        %328 = vmatpush.msra.mxu0 0.0
        %329 = vmatpush.msra.mxu0 0.0
        %330 = vmatpush.msra.mxu0 0.0
        %331 = vmatpush.msra.mxu0 0.0
        %332 = vmatpush.msra.mxu0 0.0
        %333 = vmatpush.msra.mxu0 0.0
        %334 = vmatpush.msra.mxu0 0.0
        %335 = vmatpush.msra.mxu0 0.0
        %336 = vmatpush.msra.mxu0 0.0
        %337 = vmatpush.msra.mxu0 0.0
        %338 = vmatpush.msra.mxu0 0.0
        %339 = vmatpush.msra.mxu0 %v302
        %340 = vmatmul.f32.gmra.mxu0 %v296
        %v341 = vpop.f32.mrf.mxu0
        %v342 = vadd.f32 %v293, %v341
        %343 = vdwg.mxu0
        %344 = vst [vmem:[#allocation1] ss:$2 sm:$0xff] %v196
        %v345 = vld.sshfl [vmem:[#allocation1] sm:$0xff pattern:$0x75316420]
        %v346 = vld.sshfl [vmem:[#allocation1 + $0x8] sm:$0xff pattern:$0x75316420]
        %349 = vrot.lane.b32.xlu0 %v345, 15
        %v350 = vpop.permute.xlu0 %349
        %351 = vrot.lane.b32.xlu0 %v346, 15
        %v352 = vpop.permute.xlu0 %351
        %vm353 = vcmp.lt.s32.totalorder %v208, 15
        %v354 = vsel %vm353, %v350, %v352
        %v355 = vsel %vm353, %v352, %v350
        %s356 = scalar_lea.vmem %s2, 4
        %v357 = vld [vmem:[%s356] sm:$0x3]
        %v359 = vperm.slane %v357, 0
        %v360 = vperm.slane %v357, 1
        %v363 = vmul.f32 %v355, %v359
        %v364 = vmul.f32 %v354, %v360
        %s365 = scalar_lea.vmem %s1, 16
        %v366 = vld [vmem:[%s365] sm:$0xff]
        %v368 = vsel %vm244, %v366, 0
        %v371 = vsel %vm248, %v363, 0
        %v374 = vsel %vm248, %v364, 0
        %376 = vmatpush.msra.mxu0 0.0
        %377 = vmatpush.msra.mxu0 0.0
        %378 = vmatpush.msra.mxu0 0.0
        %379 = vmatpush.msra.mxu0 0.0
        %380 = vmatpush.msra.mxu0 0.0
        %381 = vmatpush.msra.mxu0 0.0
        %382 = vmatpush.msra.mxu0 0.0
        %383 = vmatpush.msra.mxu0 0.0
        %384 = vmatpush.msra.mxu0 0.0
        %385 = vmatpush.msra.mxu0 0.0
        %386 = vmatpush.msra.mxu0 0.0
        %387 = vmatpush.msra.mxu0 0.0
        %388 = vmatpush.msra.mxu0 0.0
        %389 = vmatpush.msra.mxu0 0.0
        %390 = vmatpush.msra.mxu0 0.0
        %391 = vmatpush.msra.mxu0 %v371
        %392 = vmatmul.f32.gmra.mxu0 %v368
        %v393 = vpop.f32.mrf.mxu0
        %v394 = vadd.f32 0.0, %v393
        %395 = vdwg.mxu0
        %396 = vmatpush.msra.mxu0 0.0
        %397 = vmatpush.msra.mxu0 0.0
        %398 = vmatpush.msra.mxu0 0.0
        %399 = vmatpush.msra.mxu0 0.0
        %400 = vmatpush.msra.mxu0 0.0
        %401 = vmatpush.msra.mxu0 0.0
        %402 = vmatpush.msra.mxu0 0.0
        %403 = vmatpush.msra.mxu0 0.0
        %404 = vmatpush.msra.mxu0 0.0
        %405 = vmatpush.msra.mxu0 0.0
        %406 = vmatpush.msra.mxu0 0.0
        %407 = vmatpush.msra.mxu0 0.0
        %408 = vmatpush.msra.mxu0 0.0
        %409 = vmatpush.msra.mxu0 0.0
        %410 = vmatpush.msra.mxu0 0.0
        %411 = vmatpush.msra.mxu0 %v374
        %412 = vmatmul.f32.gmra.mxu0 %v368
        %v413 = vpop.f32.mrf.mxu0
        %v414 = vadd.f32 0.0, %v413
        %415 = vdwg.mxu0
        %v416 = vadd.f32 %v322, %v394
        %v417 = vadd.f32 %v342, %v414
        %418 = vst [vmem:[#allocation1] ss:$2 sm:$0xff] %v196
        %v419 = vld.sshfl [vmem:[#allocation1] sm:$0xff pattern:$0x75316420]
        %v420 = vld.sshfl [vmem:[#allocation1 + $0x8] sm:$0xff pattern:$0x75316420]
        %423 = vrot.lane.b32.xlu0 %v419, 1
        %v424 = vpop.permute.xlu0 %423
        %425 = vrot.lane.b32.xlu0 %v420, 1
        %v426 = vpop.permute.xlu0 %425
        %vm427 = vcmp.lt.s32.totalorder %v208, 1
        %v428 = vsel %vm427, %v424, %v426
        %v429 = vsel %vm427, %v426, %v424
        %s430 = scalar_lea.vmem %s2, 6
        %v431 = vld [vmem:[%s430] sm:$0x3]
        %v433 = vperm.slane %v431, 0
        %v434 = vperm.slane %v431, 1
        %v437 = vmul.f32 %v429, %v433
        %v438 = vmul.f32 %v428, %v434
        %s439 = scalar_lea.vmem %s1, 24
        %v440 = vld [vmem:[%s439] sm:$0xff]
        %v442 = vsel %vm244, %v440, 0
        %v445 = vsel %vm248, %v437, 0
        %v448 = vsel %vm248, %v438, 0
        %450 = vmatpush.msra.mxu0 0.0
        %451 = vmatpush.msra.mxu0 0.0
        %452 = vmatpush.msra.mxu0 0.0
        %453 = vmatpush.msra.mxu0 0.0
        %454 = vmatpush.msra.mxu0 0.0
        %455 = vmatpush.msra.mxu0 0.0
        %456 = vmatpush.msra.mxu0 0.0
        %457 = vmatpush.msra.mxu0 0.0
        %458 = vmatpush.msra.mxu0 0.0
        %459 = vmatpush.msra.mxu0 0.0
        %460 = vmatpush.msra.mxu0 0.0
        %461 = vmatpush.msra.mxu0 0.0
        %462 = vmatpush.msra.mxu0 0.0
        %463 = vmatpush.msra.mxu0 0.0
        %464 = vmatpush.msra.mxu0 0.0
        %465 = vmatpush.msra.mxu0 %v445
        %466 = vmatmul.f32.gmra.mxu0 %v442
        %v467 = vpop.f32.mrf.mxu0
        %v468 = vadd.f32 0.0, %v467
        %469 = vdwg.mxu0
        %470 = vmatpush.msra.mxu0 0.0
        %471 = vmatpush.msra.mxu0 0.0
        %472 = vmatpush.msra.mxu0 0.0
        %473 = vmatpush.msra.mxu0 0.0
        %474 = vmatpush.msra.mxu0 0.0
        %475 = vmatpush.msra.mxu0 0.0
        %476 = vmatpush.msra.mxu0 0.0
        %477 = vmatpush.msra.mxu0 0.0
        %478 = vmatpush.msra.mxu0 0.0
        %479 = vmatpush.msra.mxu0 0.0
        %480 = vmatpush.msra.mxu0 0.0
        %481 = vmatpush.msra.mxu0 0.0
        %482 = vmatpush.msra.mxu0 0.0
        %483 = vmatpush.msra.mxu0 0.0
        %484 = vmatpush.msra.mxu0 0.0
        %485 = vmatpush.msra.mxu0 %v448
        %486 = vmatmul.f32.gmra.mxu0 %v442
        %v487 = vpop.f32.mrf.mxu0
        %v488 = vadd.f32 0.0, %v487
        %489 = vdwg.mxu0
        %v490 = vadd.f32 %v416, %v468
        %v491 = vadd.f32 %v417, %v488
        %s492 = scalar_lea.vmem %s1, 32
        %v493 = vld [vmem:[%s492] sm:$0xff]
        %494 = vst [vmem:[#allocation1] ss:$2 sm:$0xff] %v196
        %v495 = vld.sshfl [vmem:[#allocation1] sm:$0xff pattern:$0x75316420]
        %v496 = vld.sshfl [vmem:[#allocation1 + $0x8] sm:$0xff pattern:$0x75316420]
        %v498 = vsel %vm244, %v493, 0
        %v500 = vsel %vm248, %v495, 0
        %v502 = vsel %vm248, %v496, 0
        %504 = vmatpush.msra.mxu0 0.0
        %505 = vmatpush.msra.mxu0 0.0
        %506 = vmatpush.msra.mxu0 0.0
        %507 = vmatpush.msra.mxu0 0.0
        %508 = vmatpush.msra.mxu0 0.0
        %509 = vmatpush.msra.mxu0 0.0
        %510 = vmatpush.msra.mxu0 0.0
        %511 = vmatpush.msra.mxu0 0.0
        %512 = vmatpush.msra.mxu0 0.0
        %513 = vmatpush.msra.mxu0 0.0
        %514 = vmatpush.msra.mxu0 0.0
        %515 = vmatpush.msra.mxu0 0.0
        %516 = vmatpush.msra.mxu0 0.0
        %517 = vmatpush.msra.mxu0 0.0
        %518 = vmatpush.msra.mxu0 0.0
        %519 = vmatpush.msra.mxu0 %v500
        %520 = vmatmul.f32.gmra.mxu0 %v498
        %v521 = vpop.f32.mrf.mxu0
        %v522 = vadd.f32 0.0, %v521
        %523 = vdwg.mxu0
        %524 = vmatpush.msra.mxu0 0.0
        %525 = vmatpush.msra.mxu0 0.0
        %526 = vmatpush.msra.mxu0 0.0
        %527 = vmatpush.msra.mxu0 0.0
        %528 = vmatpush.msra.mxu0 0.0
        %529 = vmatpush.msra.mxu0 0.0
        %530 = vmatpush.msra.mxu0 0.0
        %531 = vmatpush.msra.mxu0 0.0
        %532 = vmatpush.msra.mxu0 0.0
        %533 = vmatpush.msra.mxu0 0.0
        %534 = vmatpush.msra.mxu0 0.0
        %535 = vmatpush.msra.mxu0 0.0
        %536 = vmatpush.msra.mxu0 0.0
        %537 = vmatpush.msra.mxu0 0.0
        %538 = vmatpush.msra.mxu0 0.0
        %539 = vmatpush.msra.mxu0 %v502
        %540 = vmatmul.f32.gmra.mxu0 %v498
        %v541 = vpop.f32.mrf.mxu0
        %v542 = vadd.f32 0.0, %v541
        %543 = vdwg.mxu0
        %v544 = vadd.f32 %v490, %v522
        %v545 = vadd.f32 %v491, %v542
        %546 = vst [vmem:[#allocation1] ss:$2 sm:$0xff] %v196
        %v547 = vld.sshfl [vmem:[#allocation1] sm:$0xff pattern:$0x75316420]
        %v548 = vld.sshfl [vmem:[#allocation1 + $0x8] sm:$0xff pattern:$0x75316420]
        %551 = vrot.lane.b32.xlu0 %v547, 127
        %v552 = vpop.permute.xlu0 %551
        %553 = vrot.lane.b32.xlu0 %v548, 127
        %v554 = vpop.permute.xlu0 %553
        %vm555 = vcmp.lt.s32.totalorder %v208, 127
        %v556 = vsel %vm555, %v552, %v554
        %v557 = vsel %vm555, %v554, %v552
        %s558 = scalar_lea.vmem %s2, 10
        %v559 = vld [vmem:[%s558] sm:$0x3]
        %v561 = vperm.slane %v559, 0
        %v562 = vperm.slane %v559, 1
        %v565 = vmul.f32 %v556, %v561
        %v566 = vmul.f32 %v557, %v562
        %s567 = scalar_lea.vmem %s1, 40
        %v568 = vld [vmem:[%s567] sm:$0xff]
        %v570 = vsel %vm244, %v568, 0
        %v573 = vsel %vm248, %v565, 0
        %v576 = vsel %vm248, %v566, 0
        %578 = vmatpush.msra.mxu0 0.0
        %579 = vmatpush.msra.mxu0 0.0
        %580 = vmatpush.msra.mxu0 0.0
        %581 = vmatpush.msra.mxu0 0.0
        %582 = vmatpush.msra.mxu0 0.0
        %583 = vmatpush.msra.mxu0 0.0
        %584 = vmatpush.msra.mxu0 0.0
        %585 = vmatpush.msra.mxu0 0.0
        %586 = vmatpush.msra.mxu0 0.0
        %587 = vmatpush.msra.mxu0 0.0
        %588 = vmatpush.msra.mxu0 0.0
        %589 = vmatpush.msra.mxu0 0.0
        %590 = vmatpush.msra.mxu0 0.0
        %591 = vmatpush.msra.mxu0 0.0
        %592 = vmatpush.msra.mxu0 0.0
        %593 = vmatpush.msra.mxu0 %v573
        %594 = vmatmul.f32.gmra.mxu0 %v570
        %v595 = vpop.f32.mrf.mxu0
        %v596 = vadd.f32 0.0, %v595
        %597 = vdwg.mxu0
        %598 = vmatpush.msra.mxu0 0.0
        %599 = vmatpush.msra.mxu0 0.0
        %600 = vmatpush.msra.mxu0 0.0
        %601 = vmatpush.msra.mxu0 0.0
        %602 = vmatpush.msra.mxu0 0.0
        %603 = vmatpush.msra.mxu0 0.0
        %604 = vmatpush.msra.mxu0 0.0
        %605 = vmatpush.msra.mxu0 0.0
        %606 = vmatpush.msra.mxu0 0.0
        %607 = vmatpush.msra.mxu0 0.0
        %608 = vmatpush.msra.mxu0 0.0
        %609 = vmatpush.msra.mxu0 0.0
        %610 = vmatpush.msra.mxu0 0.0
        %611 = vmatpush.msra.mxu0 0.0
        %612 = vmatpush.msra.mxu0 0.0
        %613 = vmatpush.msra.mxu0 %v576
        %614 = vmatmul.f32.gmra.mxu0 %v570
        %v615 = vpop.f32.mrf.mxu0
        %v616 = vadd.f32 0.0, %v615
        %617 = vdwg.mxu0
        %v618 = vadd.f32 %v544, %v596
        %v619 = vadd.f32 %v545, %v616
        %620 = vst [vmem:[#allocation1] ss:$2 sm:$0xff] %v196
        %v621 = vld.sshfl [vmem:[#allocation1] sm:$0xff pattern:$0x75316420]
        %v622 = vld.sshfl [vmem:[#allocation1 + $0x8] sm:$0xff pattern:$0x75316420]
        %625 = vrot.lane.b32.xlu0 %v621, 113
        %v626 = vpop.permute.xlu0 %625
        %627 = vrot.lane.b32.xlu0 %v622, 113
        %v628 = vpop.permute.xlu0 %627
        %vm629 = vcmp.lt.s32.totalorder %v208, 113
        %v630 = vsel %vm629, %v626, %v628
        %v631 = vsel %vm629, %v628, %v626
        %s632 = scalar_lea.vmem %s2, 12
        %v633 = vld [vmem:[%s632] sm:$0x3]
        %v635 = vperm.slane %v633, 0
        %v636 = vperm.slane %v633, 1
        %v639 = vmul.f32 %v630, %v635
        %v640 = vmul.f32 %v631, %v636
        %s641 = scalar_lea.vmem %s1, 48
        %v642 = vld [vmem:[%s641] sm:$0xff]
        %v644 = vsel %vm244, %v642, 0
        %v647 = vsel %vm248, %v639, 0
        %v650 = vsel %vm248, %v640, 0
        %652 = vmatpush.msra.mxu0 0.0
        %653 = vmatpush.msra.mxu0 0.0
        %654 = vmatpush.msra.mxu0 0.0
        %655 = vmatpush.msra.mxu0 0.0
        %656 = vmatpush.msra.mxu0 0.0
        %657 = vmatpush.msra.mxu0 0.0
        %658 = vmatpush.msra.mxu0 0.0
        %659 = vmatpush.msra.mxu0 0.0
        %660 = vmatpush.msra.mxu0 0.0
        %661 = vmatpush.msra.mxu0 0.0
        %662 = vmatpush.msra.mxu0 0.0
        %663 = vmatpush.msra.mxu0 0.0
        %664 = vmatpush.msra.mxu0 0.0
        %665 = vmatpush.msra.mxu0 0.0
        %666 = vmatpush.msra.mxu0 0.0
        %667 = vmatpush.msra.mxu0 %v647
        %668 = vmatmul.f32.gmra.mxu0 %v644
        %v669 = vpop.f32.mrf.mxu0
        %v670 = vadd.f32 0.0, %v669
        %671 = vdwg.mxu0
        %672 = vmatpush.msra.mxu0 0.0
        %673 = vmatpush.msra.mxu0 0.0
        %674 = vmatpush.msra.mxu0 0.0
        %675 = vmatpush.msra.mxu0 0.0
        %676 = vmatpush.msra.mxu0 0.0
        %677 = vmatpush.msra.mxu0 0.0
        %678 = vmatpush.msra.mxu0 0.0
        %679 = vmatpush.msra.mxu0 0.0
        %680 = vmatpush.msra.mxu0 0.0
        %681 = vmatpush.msra.mxu0 0.0
        %682 = vmatpush.msra.mxu0 0.0
        %683 = vmatpush.msra.mxu0 0.0
        %684 = vmatpush.msra.mxu0 0.0
        %685 = vmatpush.msra.mxu0 0.0
        %686 = vmatpush.msra.mxu0 0.0
        %687 = vmatpush.msra.mxu0 %v650
        %688 = vmatmul.f32.gmra.mxu0 %v644
        %v689 = vpop.f32.mrf.mxu0
        %v690 = vadd.f32 0.0, %v689
        %691 = vdwg.mxu0
        %v692 = vadd.f32 %v618, %v670
        %v693 = vadd.f32 %v619, %v690
        %694 = vst [vmem:[#allocation1] ss:$2 sm:$0xff] %v196
        %v695 = vld.sshfl [vmem:[#allocation1] sm:$0xff pattern:$0x75316420]
        %v696 = vld.sshfl [vmem:[#allocation1 + $0x8] sm:$0xff pattern:$0x75316420]
        %699 = vrot.lane.b32.xlu0 %v695, 112
        %v700 = vpop.permute.xlu0 %699
        %701 = vrot.lane.b32.xlu0 %v696, 112
        %v702 = vpop.permute.xlu0 %701
        %vm703 = vcmp.lt.s32.totalorder %v208, 112
        %v704 = vsel %vm703, %v700, %v702
        %v705 = vsel %vm703, %v702, %v700
        %s706 = scalar_lea.vmem %s2, 14
        %v707 = vld [vmem:[%s706] sm:$0x3]
        %v709 = vperm.slane %v707, 0
        %v710 = vperm.slane %v707, 1
        %v713 = vmul.f32 %v704, %v709
        %v714 = vmul.f32 %v705, %v710
        %s715 = scalar_lea.vmem %s1, 56
        %v716 = vld [vmem:[%s715] sm:$0xff]
        %v718 = vsel %vm244, %v716, 0
        %v721 = vsel %vm248, %v713, 0
        %v724 = vsel %vm248, %v714, 0
        %726 = vmatpush.msra.mxu0 0.0
        %727 = vmatpush.msra.mxu0 0.0
        %728 = vmatpush.msra.mxu0 0.0
        %729 = vmatpush.msra.mxu0 0.0
        %730 = vmatpush.msra.mxu0 0.0
        %731 = vmatpush.msra.mxu0 0.0
        %732 = vmatpush.msra.mxu0 0.0
        %733 = vmatpush.msra.mxu0 0.0
        %734 = vmatpush.msra.mxu0 0.0
        %735 = vmatpush.msra.mxu0 0.0
        %736 = vmatpush.msra.mxu0 0.0
        %737 = vmatpush.msra.mxu0 0.0
        %738 = vmatpush.msra.mxu0 0.0
        %739 = vmatpush.msra.mxu0 0.0
        %740 = vmatpush.msra.mxu0 0.0
        %741 = vmatpush.msra.mxu0 %v721
        %742 = vmatmul.f32.gmra.mxu0 %v718
        %v743 = vpop.f32.mrf.mxu0
        %v744 = vadd.f32 0.0, %v743
        %745 = vdwg.mxu0
        %746 = vmatpush.msra.mxu0 0.0
        %747 = vmatpush.msra.mxu0 0.0
        %748 = vmatpush.msra.mxu0 0.0
        %749 = vmatpush.msra.mxu0 0.0
        %750 = vmatpush.msra.mxu0 0.0
        %751 = vmatpush.msra.mxu0 0.0
        %752 = vmatpush.msra.mxu0 0.0
        %753 = vmatpush.msra.mxu0 0.0
        %754 = vmatpush.msra.mxu0 0.0
        %755 = vmatpush.msra.mxu0 0.0
        %756 = vmatpush.msra.mxu0 0.0
        %757 = vmatpush.msra.mxu0 0.0
        %758 = vmatpush.msra.mxu0 0.0
        %759 = vmatpush.msra.mxu0 0.0
        %760 = vmatpush.msra.mxu0 0.0
        %761 = vmatpush.msra.mxu0 %v724
        %762 = vmatmul.f32.gmra.mxu0 %v718
        %v763 = vpop.f32.mrf.mxu0
        %v764 = vadd.f32 0.0, %v763
        %765 = vdwg.mxu0
        %v766 = vadd.f32 %v692, %v744
        %v767 = vadd.f32 %v693, %v764
        %768 = vst [vmem:[#allocation1] ss:$2 sm:$0xff] %v196
        %v769 = vld.sshfl [vmem:[#allocation1] sm:$0xff pattern:$0x75316420]
        %v770 = vld.sshfl [vmem:[#allocation1 + $0x8] sm:$0xff pattern:$0x75316420]
        %773 = vrot.lane.b32.xlu0 %v769, 111
        %v774 = vpop.permute.xlu0 %773
        %775 = vrot.lane.b32.xlu0 %v770, 111
        %v776 = vpop.permute.xlu0 %775
        %vm777 = vcmp.lt.s32.totalorder %v208, 111
        %v778 = vsel %vm777, %v774, %v776
        %v779 = vsel %vm777, %v776, %v774
        %s780 = scalar_lea.vmem %s2, 16
        %v781 = vld [vmem:[%s780] sm:$0x3]
        %v783 = vperm.slane %v781, 0
        %v784 = vperm.slane %v781, 1
        %v787 = vmul.f32 %v778, %v783
        %v788 = vmul.f32 %v779, %v784
        %s789 = scalar_lea.vmem %s1, 64
        %v790 = vld [vmem:[%s789] sm:$0xff]
        %v792 = vsel %vm244, %v790, 0
        %v795 = vsel %vm248, %v787, 0
        %v798 = vsel %vm248, %v788, 0
        %800 = vmatpush.msra.mxu0 0.0
        %801 = vmatpush.msra.mxu0 0.0
        %802 = vmatpush.msra.mxu0 0.0
        %803 = vmatpush.msra.mxu0 0.0
        %804 = vmatpush.msra.mxu0 0.0
        %805 = vmatpush.msra.mxu0 0.0
        %806 = vmatpush.msra.mxu0 0.0
        %807 = vmatpush.msra.mxu0 0.0
        %808 = vmatpush.msra.mxu0 0.0
        %809 = vmatpush.msra.mxu0 0.0
        %810 = vmatpush.msra.mxu0 0.0
        %811 = vmatpush.msra.mxu0 0.0
        %812 = vmatpush.msra.mxu0 0.0
        %813 = vmatpush.msra.mxu0 0.0
        %814 = vmatpush.msra.mxu0 0.0
        %815 = vmatpush.msra.mxu0 %v795
        %816 = vmatmul.f32.gmra.mxu0 %v792
        %v817 = vpop.f32.mrf.mxu0
        %v818 = vadd.f32 0.0, %v817
        %819 = vdwg.mxu0
        %820 = vmatpush.msra.mxu0 0.0
        %821 = vmatpush.msra.mxu0 0.0
        %822 = vmatpush.msra.mxu0 0.0
        %823 = vmatpush.msra.mxu0 0.0
        %824 = vmatpush.msra.mxu0 0.0
        %825 = vmatpush.msra.mxu0 0.0
        %826 = vmatpush.msra.mxu0 0.0
        %827 = vmatpush.msra.mxu0 0.0
        %828 = vmatpush.msra.mxu0 0.0
        %829 = vmatpush.msra.mxu0 0.0
        %830 = vmatpush.msra.mxu0 0.0
        %831 = vmatpush.msra.mxu0 0.0
        %832 = vmatpush.msra.mxu0 0.0
        %833 = vmatpush.msra.mxu0 0.0
        %834 = vmatpush.msra.mxu0 0.0
        %835 = vmatpush.msra.mxu0 %v798
        %836 = vmatmul.f32.gmra.mxu0 %v792
        %v837 = vpop.f32.mrf.mxu0
        %v838 = vadd.f32 0.0, %v837
        %839 = vdwg.mxu0
        %v840 = vadd.f32 %v766, %v818
        %v841 = vadd.f32 %v767, %v838
        %v842 = vld [vmem:[%s3] sm:$0xff]
        %844 = vset.pattern.permute.xlu0 0
        %845 = vperm.xlu0 %844, %v842
        %v846 = vpop.permute.xlu0 %845
        %v848 = vadd.f32 %v840, %v846
        %v849 = vadd.f32 %v841, %v846
        %v850 = vmax.f32 %v848, 0.0
        %v851 = vmax.f32 %v849, 0.0
        %852 = vst [vmem:[%s190] sm:$0xff] %v850
        %853 = vst [vmem:[%s190 + $0x8] sm:$0xff] %v851
        %s854 = sand.u32 %s115, 1
        %s855 = scalar_lea.sflag [#allocation3], %s854
        %s856 = sand.u32 %s115, 1
        %s857 = smul.addr %s856, 16
        %s858 = scalar_lea.vmem [#allocation2], %s857
        // Predicated region
        $region37: #{tpu_custom_call.1} parent=35 // pred_check
          %p859 = pneg %p125
        $region38: #{tpu_custom_call.1} parent=35 // pred_check_branch
          %861 = sbr.rel (%p859) target = $region40
        $region39: #{tpu_custom_call.1} parent=35 // pred_region
          %863 = vsyncadd %s855, 0
          %s864 = smul.addr %s18, 2
          %s865 = smul.addr %s864, 8
          %s866 = scalar_lea.hbm %s4, %s865
          %s868 = sshll.u32 %s858, 4
          %s869 = int_to_ptr.vmem [resolvable:$true] %s868
          %s870 = sshll.u32 %s866, 4
          %s871 = int_to_ptr.hbm [resolvable:$true] %s870
          %873 = dma.vmem_to_hbm [thread:$0]  %s869, 256, %s871, %s855
        $region40: #{tpu_custom_call.1} parent=35 // pred_fallthru
          _
      $region36: #{tpu_custom_call.1} parent=5 // pred_fallthru
        _
      %p874 = scmp.le.s32.totalorder 2, %s13
      // Predicated region
      $region41: #{tpu_custom_call.1} parent=5 // pred_check
        %p875 = pneg %p874
      $region42: #{tpu_custom_call.1} parent=5 // pred_check_branch
        %877 = sbr.rel (%p875) target = $region44
      $region43: #{tpu_custom_call.1} parent=5 // pred_region
        %s878 = ssub.s32 %s13, 2
        // Predicated region
        $region45: #{tpu_custom_call.1} parent=43 // pred_check
          %p879 = pneg %p131
        $region46: #{tpu_custom_call.1} parent=43 // pred_check_branch
          %881 = sbr.rel (%p879) target = $region48
        $region47: #{tpu_custom_call.1} parent=43 // pred_region
          %s882 = sand.u32 %s116, 1
          %s883 = scalar_lea.sflag [#allocation3], %s882
          %s884 = sand.u32 %s116, 1
          %s885 = smul.addr %s884, 16
          %s886 = scalar_lea.vmem [#allocation2], %s885
          %888 = dma.done %s883, 256
        $region48: #{tpu_custom_call.1} parent=43 // pred_fallthru
          _
      $region44: #{tpu_custom_call.1} parent=5 // pred_fallthru
        _
    $region6: #{tpu_custom_call.1} parent=1 // loop_footer
      %s17 = sadd.s32 1, %s13
    $region7: #{tpu_custom_call.1} parent=1 // loop_footer_branch
      %12 = sbr.rel target = $region3
    $region8: #{tpu_custom_call.1} parent=1 // loop_exit
      _
    %889 = vsyncpa [#allocation3], 1
    %s890 = scalar_lea.sflag [#allocation3], 1
    %891 = vsyncpa %s890, 1

</llo_original>
